<compile_context>
chip_gen: v7x
topology: tpu7x:2x2x1
jax: 0.10.0
libtpu: 0.0.40
codegen_flags: <defaults>
</compile_context>

<pallas_src>
import functools
import math

import jax
import jax.numpy as jnp
import numpy as np
from jax import lax
from jax.experimental import pallas as pl
from jax.experimental.pallas import tpu as pltpu


# ------------------------------ tiling config --------------------------------

_VMEM_TILE_BUDGET = 32 << 20   # target per-kernel VMEM working set
_VMEM_LIMIT = 48 << 20         # explicit Mosaic scoped-VMEM limit (v7x has 64 MiB physical)
_SPLIT_THRESHOLD = 256         # above this many rows, force >=2 grid steps (v7x megacore)


def _cparams(n_axes):
    return pltpu.CompilerParams(
        dimension_semantics=("parallel",) * n_axes,
        vmem_limit_bytes=_VMEM_LIMIT)


def _row_tile(n_rows, row_bytes, fixed_bytes=0, *, max_tile=2048):
    """Largest row tile (multiple of 8, dividing n_rows) inside the VMEM budget.

    row_bytes:   bytes of one row summed over all row-tiled operands, already
                 including the x2 double-buffering where relevant.
    fixed_bytes: bytes of operands resident regardless of the row tile
                 (whole weight / bias blocks, double-buffered).
    """
    avail = max(_VMEM_TILE_BUDGET - fixed_bytes, 8 * row_bytes)
    cap = min(max_tile, max(8, avail // max(1, row_bytes)))
    if n_rows >= 2 * _SPLIT_THRESHOLD:
        cap = min(cap, n_rows // 2)      # keep >=2 grid steps so both v7x cores work
    if n_rows <= cap:
        return n_rows
    t = (cap // 8) * 8
    while t >= 8:
        if n_rows % t == 0:
            return t
        t -= 8
    # No multiple-of-8 divisor fits; fall back to the full extent (always
    # layout-legal; only exceeds the budget for pathological odd row counts).
    return n_rows


def _col_tile(d_in, d_out):
    """Largest 128-aligned d_out tile whose double-buffered weight block fits."""
    w_budget = _VMEM_TILE_BUDGET // 2
    if 2 * 4 * d_in * d_out <= w_budget or d_out <= 128:
        return d_out
    cap = max(128, (w_budget // (2 * 4 * d_in)) // 128 * 128)
    t = min(cap, (d_out // 128) * 128)
    while t >= 128:
        if d_out % t == 0:
            return t
        t -= 128
    return d_out


# ----------------------------- fixed PE buffer -------------------------------

def make_positional_encoding(hidden_size, max_len=5000, dtype=jnp.float32):
    """Sin/cos buffer identical to the PyTorch PositionalEncoding.__init__."""
    position = jnp.arange(max_len, dtype=jnp.float32)[:, None]            # (L, 1)
    div_term = jnp.exp(jnp.arange(0, hidden_size, 2, dtype=jnp.float32)
                       * (-(math.log(10000.0) / hidden_size)))            # (H/2,)
    angles = position * div_term                                          # (L, H/2)
    pe = jnp.zeros((max_len, hidden_size), dtype=jnp.float32)
    pe = pe.at[:, 0::2].set(jnp.sin(angles))
    pe = pe.at[:, 1::2].set(jnp.cos(angles))
    return pe.astype(dtype)                                               # (L, H)


# -------------------------------- kernels ------------------------------------

def _linear_kernel(x_ref, w_ref, b_ref, o_ref, *, activation, mm_dtype):
    # x_ref: (t, In), w_ref: (In, tn), b_ref: (1, tn), o_ref: (t, tn)
    y = jnp.dot(x_ref[...].astype(mm_dtype), w_ref[...].astype(mm_dtype),
                preferred_element_type=jnp.float32) + b_ref[...]
    if activation == "relu":
        y = jnp.maximum(y, 0.0)
    o_ref[...] = y.astype(o_ref.dtype)


def _linear_pe_kernel(x_ref, w_ref, b_ref, pe_ref, o_ref, *, mm_dtype):
    # Embedding matmul with the positional-encoding add fused into the epilogue.
    y = jnp.dot(x_ref[...].astype(mm_dtype), w_ref[...].astype(mm_dtype),
                preferred_element_type=jnp.float32)
    o_ref[...] = (y + b_ref[...] + pe_ref[...]).astype(o_ref.dtype)


def _pe_add_kernel(x_ref, pe_ref, o_ref):
    # Standalone PE add (only used when use_embedding_layer=False).
    o_ref[...] = (x_ref[...] + pe_ref[...]).astype(o_ref.dtype)


def _attn_kernel(qkv_ref, o_ref, *, num_heads, head_dim, hidden, scale, mm_dtype):
    # qkv_ref: (S, 3H) for one batch; o_ref: (S, H) — all heads written lane-dense.
    qkv = qkv_ref[...]
    heads = []
    for h in range(num_heads):
        q = qkv[:, h * head_dim:(h + 1) * head_dim].astype(jnp.float32) * scale
        k = qkv[:, hidden + h * head_dim: hidden + (h + 1) * head_dim]
        v = qkv[:, 2 * hidden + h * head_dim: 2 * hidden + (h + 1) * head_dim]
        # Contract the head dim directly: no k.T materialization.
        s = lax.dot_general(q.astype(mm_dtype), k.astype(mm_dtype),
                            (((1,), (1,)), ((), ())),
                            preferred_element_type=jnp.float32)           # (S, S)
        m = jnp.max(s, axis=-1, keepdims=True)
        p = jnp.exp(s - m)
        l = jnp.sum(p, axis=-1, keepdims=True)
        inv = pl.reciprocal(l, approx=True)          # EUP slot
        inv = inv * (2.0 - l * inv)                  # one Newton step on (S,1): ~f32 exact
        p = p * inv
        heads.append(jnp.dot(p.astype(mm_dtype), v.astype(mm_dtype),
                             preferred_element_type=jnp.float32))
    o_ref[...] = jnp.concatenate(heads, axis=-1).astype(o_ref.dtype)


def _proj_add_ln_kernel(x_ref, r_ref, w_ref, b_ref, g_ref, bb_ref, o_ref, *, eps, mm_dtype):
    # LayerNorm(r + x @ W + b): out_proj matmul with residual + LN fused epilogue.
    y = jnp.dot(x_ref[...].astype(mm_dtype), w_ref[...].astype(mm_dtype),
                preferred_element_type=jnp.float32)
    y = y + b_ref[...] + r_ref[...].astype(jnp.float32)
    mean = jnp.mean(y, axis=-1, keepdims=True)
    c = y - mean
    var = jnp.mean(c * c, axis=-1, keepdims=True)
    inv = lax.rsqrt(var + eps)
    o_ref[...] = (c * inv * g_ref[...] + bb_ref[...]).astype(o_ref.dtype)


def _ffn_ln_kernel(x_ref, w1_ref, b1_ref, w2_ref, b2_ref, g_ref, bb_ref, o_ref, *,
                   eps, mm_dtype):
    # LayerNorm(x + relu(x @ W1 + b1) @ W2 + b2); the (t, 2H) intermediate never
    # leaves VMEM.
    x = x_ref[...]
    t1 = jnp.dot(x.astype(mm_dtype), w1_ref[...].astype(mm_dtype),
                 preferred_element_type=jnp.float32) + b1_ref[...]
    t1 = jnp.maximum(t1, 0.0)
    y = jnp.dot(t1.astype(mm_dtype), w2_ref[...].astype(mm_dtype),
                preferred_element_type=jnp.float32)
    y = y + b2_ref[...] + x.astype(jnp.float32)
    mean = jnp.mean(y, axis=-1, keepdims=True)
    c = y - mean
    var = jnp.mean(c * c, axis=-1, keepdims=True)
    inv = lax.rsqrt(var + eps)
    o_ref[...] = (c * inv * g_ref[...] + bb_ref[...]).astype(o_ref.dtype)


# -------------------------------- wrappers ------------------------------------

def linear(x2d, w, b, *, activation=None, mm_dtype=jnp.float32):
    """y = act(x2d @ w + b), tiled over rows and (if large) over d_out columns."""
    n, d_in = x2d.shape
    d_out = w.shape[1]
    tn = _col_tile(d_in, d_out)
    fixed = 2 * 4 * (d_in * tn + tn)                       # weight + bias, double-buffered
    t = _row_tile(n, 2 * 4 * (d_in + tn), fixed)
    kernel = functools.partial(_linear_kernel, activation=activation, mm_dtype=mm_dtype)
    return pl.pallas_call(
        kernel,
        out_shape=jax.ShapeDtypeStruct((n, d_out), x2d.dtype),
        grid=(n // t, d_out // tn),
        in_specs=[
            pl.BlockSpec((t, d_in), lambda i, j: (i, 0)),
            pl.BlockSpec((d_in, tn), lambda i, j: (0, j)),
            pl.BlockSpec((1, tn), lambda i, j: (0, j)),
        ],
        out_specs=pl.BlockSpec((t, tn), lambda i, j: (i, j)),
        compiler_params=_cparams(2),
    )(x2d, w, b.reshape(1, d_out))


def linear_with_pe(x, w, b, pe, *, mm_dtype=jnp.float32):
    """Fused input embedding + positional encoding: (x @ w + b) + pe[:S]."""
    B, S, d_in = x.shape
    d_out = w.shape[1]
    x2d = x.reshape(B * S, d_in)
    pe_s = pe[:S]
    fixed = 2 * 4 * (d_in * d_out + d_out)
    t = _row_tile(S, 2 * 4 * (d_in + 2 * d_out), fixed)    # tile divides S -> PE rows align
    n = B * S
    blocks_per_seq = S // t
    out = pl.pallas_call(
        functools.partial(_linear_pe_kernel, mm_dtype=mm_dtype),
        out_shape=jax.ShapeDtypeStruct((n, d_out), x.dtype),
        grid=(n // t,),
        in_specs=[
            pl.BlockSpec((t, d_in), lambda i: (i, 0)),
            pl.BlockSpec((d_in, d_out), lambda i: (0, 0)),
            pl.BlockSpec((1, d_out), lambda i: (0, 0)),
            pl.BlockSpec((t, d_out), lambda i: (i % blocks_per_seq, 0)),
        ],
        out_specs=pl.BlockSpec((t, d_out), lambda i: (i, 0)),
        compiler_params=_cparams(1),
    )(x2d, w, b.reshape(1, d_out), pe_s)
    return out.reshape(B, S, d_out)


def pe_add(x, pe):
    """Standalone PE add on a flattened (B*S, H) view (no embedding layer)."""
    B, S, H = x.shape
    x2d = x.reshape(B * S, H)
    pe_s = pe[:S]
    t = _row_tile(S, 2 * 4 * 3 * H)
    blocks_per_seq = S // t
    out = pl.pallas_call(
        _pe_add_kernel,
        out_shape=jax.ShapeDtypeStruct((B * S, H), x.dtype),
        grid=((B * S) // t,),
        in_specs=[
            pl.BlockSpec((t, H), lambda i: (i, 0)),
            pl.BlockSpec((t, H), lambda i: (i % blocks_per_seq, 0)),
        ],
        out_specs=pl.BlockSpec((t, H), lambda i: (i, 0)),
        compiler_params=_cparams(1),
    )(x2d, pe_s)
    return out.reshape(B, S, H)


def mha_attention_packed(qkv, B, S, H, num_heads, *, mm_dtype=jnp.float32):
    """Multi-head attention directly on the packed (B*S, 3H) qkv tensor.

    Grid = batch axis; each step computes every head for one sequence and writes
    a single lane-dense (S, H) block, so the result is already in (B*S, H) layout
    (no split / head transposes at the XLA level).
    """
    dh = H // num_heads
    qkv3 = qkv.reshape(B, S, 3 * H)
    kernel = functools.partial(_attn_kernel, num_heads=num_heads, head_dim=dh,
                               hidden=H, scale=1.0 / math.sqrt(dh), mm_dtype=mm_dtype)
    out = pl.pallas_call(
        kernel,
        out_shape=jax.ShapeDtypeStruct((B, S, H), qkv.dtype),
        grid=(B,),
        in_specs=[pl.BlockSpec((None, S, 3 * H), lambda b: (b, 0, 0))],
        out_specs=pl.BlockSpec((None, S, H), lambda b: (b, 0, 0)),
        compiler_params=_cparams(1),
    )(qkv3)
    return out.reshape(B * S, H)


def proj_add_layernorm(x2d, r2d, w, b, gamma, beta, *, eps=1e-5, mm_dtype=jnp.float32):
    """LayerNorm(r + x @ w + b) — out_proj fused with residual add + LN1."""
    n, d_in = x2d.shape
    d_out = w.shape[1]                     # == H; LN needs the full row, no col tiling
    fixed = 2 * 4 * (d_in * d_out + 3 * d_out)
    t = _row_tile(n, 2 * 4 * (d_in + 2 * d_out), fixed)
    kernel = functools.partial(_proj_add_ln_kernel, eps=eps, mm_dtype=mm_dtype)
    return pl.pallas_call(
        kernel,
        out_shape=jax.ShapeDtypeStruct((n, d_out), x2d.dtype),
        grid=(n // t,),
        in_specs=[
            pl.BlockSpec((t, d_in), lambda i: (i, 0)),
            pl.BlockSpec((t, d_out), lambda i: (i, 0)),
            pl.BlockSpec((d_in, d_out), lambda i: (0, 0)),
            pl.BlockSpec((1, d_out), lambda i: (0, 0)),
            pl.BlockSpec((1, d_out), lambda i: (0, 0)),
            pl.BlockSpec((1, d_out), lambda i: (0, 0)),
        ],
        out_specs=pl.BlockSpec((t, d_out), lambda i: (i, 0)),
        compiler_params=_cparams(1),
    )(x2d, r2d, w, b.reshape(1, d_out), gamma.reshape(1, d_out), beta.reshape(1, d_out))


def ffn_layernorm(x2d, w1, b1, w2, b2, gamma, beta, *, eps=1e-5, mm_dtype=jnp.float32):
    """LayerNorm(x + relu(x@w1+b1)@w2 + b2) — whole FFN block in one kernel."""
    n, H = x2d.shape
    F = w1.shape[1]
    fixed = 2 * 4 * (H * F + F + F * H + 3 * H)             # both weights, all vectors
    row_bytes = 2 * 4 * (2 * H) + 4 * F                     # x + out tiled, (t,F) in VMEM
    t = _row_tile(n, row_bytes, fixed)
    kernel = functools.partial(_ffn_ln_kernel, eps=eps, mm_dtype=mm_dtype)
    return pl.pallas_call(
        kernel,
        out_shape=jax.ShapeDtypeStruct((n, H), x2d.dtype),
        grid=(n // t,),
        in_specs=[
            pl.BlockSpec((t, H), lambda i: (i, 0)),
            pl.BlockSpec((H, F), lambda i: (0, 0)),
            pl.BlockSpec((1, F), lambda i: (0, 0)),
            pl.BlockSpec((F, H), lambda i: (0, 0)),
            pl.BlockSpec((1, H), lambda i: (0, 0)),
            pl.BlockSpec((1, H), lambda i: (0, 0)),
            pl.BlockSpec((1, H), lambda i: (0, 0)),
        ],
        out_specs=pl.BlockSpec((t, H), lambda i: (i, 0)),
        compiler_params=_cparams(1),
    )(x2d, w1, b1.reshape(1, F), w2, b2.reshape(1, H),
      gamma.reshape(1, H), beta.reshape(1, H))


# ------------------------------ model forward ---------------------------------

def transformer_forward(params, x, config):
    """Eval-mode TransformerModel.forward. x: (B, S, input_size)."""
    B, S, _ = x.shape
    H = config["hidden_size"]
    nh = config["num_heads"]
    mm_dtype = config.get("matmul_dtype", jnp.float32)

    # input_embedding (+ fused positional encoding)
    if config["use_embedding_layer"]:
        if config["positional_encoding"]:
            h = linear_with_pe(x, params["embed_w"], params["embed_b"], params["pe"],
                               mm_dtype=mm_dtype)
        else:
            h = linear(x.reshape(B * S, -1), params["embed_w"], params["embed_b"],
                       mm_dtype=mm_dtype).reshape(B, S, H)
    else:
        # nn.Identity(); hidden_size == input_size in this configuration.
        h = pe_add(x, params["pe"]) if config["positional_encoding"] else x

    h2d = h.reshape(B * S, H)
    for layer in params["layers"]:
        # --- self-attention block (post-norm) ---
        qkv = linear(h2d, layer["in_proj_w"], layer["in_proj_b"], mm_dtype=mm_dtype)
        attn2d = mha_attention_packed(qkv, B, S, H, nh, mm_dtype=mm_dtype)
        h2d = proj_add_layernorm(attn2d, h2d, layer["out_proj_w"], layer["out_proj_b"],
                                 layer["ln1_g"], layer["ln1_b"], mm_dtype=mm_dtype)
        # --- feed-forward block (post-norm, relu), fully fused ---
        h2d = ffn_layernorm(h2d, layer["ff1_w"], layer["ff1_b"], layer["ff2_w"],
                            layer["ff2_b"], layer["ln2_g"], layer["ln2_b"],
                            mm_dtype=mm_dtype)

    h3d = h2d.reshape(B, S, H)
    # Tiny head (out_size=3) + seq mean kept in plain JAX per perf review:
    # 1-step grid + <128-lane masked stores would cost more than the compute.
    final_hidden = h3d.mean(axis=1) if config["aggregate_hidden"] else h3d[:, -1, :]
    prediction = jnp.dot(final_hidden, params["fc_w"],
                         precision=lax.Precision.HIGHEST) + params["fc_b"]
    if config["predict_difference"]:
        # Intended column broadcast of x[:, -1, endogenous_idx] over output_size.
        prediction = h3d[:, -1, config["endogenous_idx"]][:, None] + prediction
    return prediction, final_hidden


# ---------------------------- pure-JAX reference ------------------------------

def _ln_ref(y, g, b, eps=1e-5):
    mean = jnp.mean(y, axis=-1, keepdims=True)
    c = y - mean
    var = jnp.mean(c * c, axis=-1, keepdims=True)
    return c * lax.rsqrt(var + eps) * g + b


def transformer_forward_ref(params, x, config):
    B, S, _ = x.shape
    H = config["hidden_size"]
    nh = config["num_heads"]
    dh = H // nh
    hp = lax.Precision.HIGHEST

    if config["use_embedding_layer"]:
        h = jnp.dot(x, params["embed_w"], precision=hp) + params["embed_b"]
    else:
        h = x
    if config["positional_encoding"]:
        h = h + params["pe"][None, :S, :]

    for layer in params["layers"]:
        qkv = jnp.dot(h, layer["in_proj_w"], precision=hp) + layer["in_proj_b"]
        q, k, v = jnp.split(qkv, 3, axis=-1)
        q = q.reshape(B, S, nh, dh).transpose(0, 2, 1, 3)
        k = k.reshape(B, S, nh, dh).transpose(0, 2, 1, 3)
        v = v.reshape(B, S, nh, dh).transpose(0, 2, 1, 3)
        s = jnp.einsum("bhqd,bhkd->bhqk", q, k, precision=hp) * (1.0 / math.sqrt(dh))
        p = jax.nn.softmax(s, axis=-1)
        attn = jnp.einsum("bhqk,bhkd->bhqd", p, v, precision=hp)
        attn = attn.transpose(0, 2, 1, 3).reshape(B, S, H)
        attn = jnp.dot(attn, layer["out_proj_w"], precision=hp) + layer["out_proj_b"]
        h = _ln_ref(h + attn, layer["ln1_g"], layer["ln1_b"])
        ff = jnp.maximum(jnp.dot(h, layer["ff1_w"], precision=hp) + layer["ff1_b"], 0.0)
        ff = jnp.dot(ff, layer["ff2_w"], precision=hp) + layer["ff2_b"]
        h = _ln_ref(h + ff, layer["ln2_g"], layer["ln2_b"])

    final_hidden = h.mean(axis=1) if config["aggregate_hidden"] else h[:, -1, :]
    pred = jnp.dot(final_hidden, params["fc_w"], precision=hp) + params["fc_b"]
    if config["predict_difference"]:
        pred = h[:, -1, config["endogenous_idx"]][:, None] + pred
    return pred, final_hidden


# -------------------------------- params init ---------------------------------

def init_params(key, config):
    H = config["hidden_size"]
    in_size = config["input_size"]
    out_size = config["output_size"]
    L = config["num_layers"]
    ff = 2 * H
    keys = iter(jax.random.split(key, 4 + 6 * L))

    def w(shape):
        scale = 1.0 / math.sqrt(shape[0])
        return jax.random.normal(next(keys), shape, dtype=jnp.float32) * scale

    params = {}
    if config["use_embedding_layer"]:
        params["embed_w"] = w((in_size, H))
        params["embed_b"] = jnp.zeros((H,), jnp.float32)
    if config["positional_encoding"]:
        params["pe"] = make_positional_encoding(H, max_len=config["sequence_length"])
    layers = []
    for _ in range(L):
        layers.append(dict(
            in_proj_w=w((H, 3 * H)), in_proj_b=jnp.zeros((3 * H,), jnp.float32),
            out_proj_w=w((H, H)), out_proj_b=jnp.zeros((H,), jnp.float32),
            ln1_g=jnp.ones((H,), jnp.float32), ln1_b=jnp.zeros((H,), jnp.float32),
            ff1_w=w((H, ff)), ff1_b=jnp.zeros((ff,), jnp.float32),
            ff2_w=w((ff, H)), ff2_b=jnp.zeros((H,), jnp.float32),
            ln2_g=jnp.ones((H,), jnp.float32), ln2_b=jnp.zeros((H,), jnp.float32),
        ))
    params["layers"] = layers
    params["fc_w"] = w((H, out_size))
    params["fc_b"] = jnp.zeros((out_size,), jnp.float32)
    return params


# ----------------------------------- main --------------------------------------

if __name__ == "__main__":
    B, S = 2, 8
    base_config = dict(
        input_size=4, sequence_length=S, hidden_size=32, use_embedding_layer=True,
        output_size=3, num_heads=4, num_layers=2, positional_encoding=True,
        dropout=0.1, aggregate_hidden=True, predict_difference=False,
        endogenous_idx=0,
    )

    key = jax.random.PRNGKey(0)
    kx, kp = jax.random.split(key)
    x = jax.random.normal(kx, (B, S, base_config["input_size"]), dtype=jnp.float32)
    params = init_params(kp, base_config)

    pred_ref, hidden_ref = transformer_forward_ref(params, x, base_config)

    # f32 matmul operands (exact eval-mode semantics) — tight tolerance.
    cfg_f32 = dict(base_config, matmul_dtype=jnp.float32)
    pred, hidden = transformer_forward(params, x, cfg_f32)
    jax.block_until_ready((pred, hidden))
    np.testing.assert_allclose(np.asarray(pred), np.asarray(pred_ref),
                               rtol=2e-3, atol=2e-3)
    np.testing.assert_allclose(np.asarray(hidden), np.asarray(hidden_ref),
                               rtol=2e-3, atol=2e-3)

    # bf16 matmul operands, f32 accumulation (v6e/v7x MXU path) — loose tolerance.
    cfg_bf16 = dict(base_config, matmul_dtype=jnp.bfloat16)
    pred_b, hidden_b = transformer_forward(params, x, cfg_bf16)
    jax.block_until_ready((pred_b, hidden_b))
    np.testing.assert_allclose(np.asarray(pred_b), np.asarray(pred_ref),
                               rtol=5e-2, atol=5e-2)
    np.testing.assert_allclose(np.asarray(hidden_b), np.asarray(hidden_ref),
                               rtol=5e-2, atol=5e-2)

    print("KERNEL_OK")
</pallas_src>

<mosaic_0001>
module attributes {stable_mosaic.version = 11 : i64} {
  func.func @_linear_pe_kernel(%arg0: i32, %arg1: memref<8x4xf32, #tpu.memory_space<vmem>>, %arg2: memref<4x32xf32, #tpu.memory_space<vmem>>, %arg3: memref<1x32xf32, #tpu.memory_space<vmem>>, %arg4: memref<8x32xf32, #tpu.memory_space<vmem>>, %arg5: memref<8x32xf32, #tpu.memory_space<vmem>>) attributes {dimension_semantics = [#tpu.dimension_semantics<parallel>], iteration_bounds = array<i64: 2>, scalar_prefetch = 0 : i64, scratch_operands = 0 : i64, tpu.core_type = #tpu.core_type<tc>, window_params = [{transform_indices = @transform_0, window_bounds = array<i64: 8, 4>}, {pipeline_mode = #tpu.pipeline_mode<synchronous>, transform_indices = @transform_1, window_bounds = array<i64: 4, 32>}, {pipeline_mode = #tpu.pipeline_mode<synchronous>, transform_indices = @transform_2, window_bounds = array<i64: 1, 32>}, {transform_indices = @transform_3, window_bounds = array<i64: 8, 32>}, {transform_indices = @transform_4, window_bounds = array<i64: 8, 32>}]} {
    %c0 = arith.constant 0 : index
    %c0_0 = arith.constant 0 : index
    %0 = vector.load %arg1[%c0, %c0_0] : memref<8x4xf32, #tpu.memory_space<vmem>>, vector<8x4xf32>
    %c0_1 = arith.constant 0 : index
    %c0_2 = arith.constant 0 : index
    %1 = vector.load %arg2[%c0_1, %c0_2] : memref<4x32xf32, #tpu.memory_space<vmem>>, vector<4x32xf32>
    %cst = arith.constant dense<0.000000e+00> : vector<8x32xf32>
    %2 = tpu.matmul %0, %1, %cst {dimension_numbers = #tpu.dot_dimension_numbers<[1], [0], [0], [1], [0, 0, 1, 1], [], []>} : vector<8x4xf32>, vector<4x32xf32>, vector<8x32xf32> -> vector<8x32xf32>
    %c0_3 = arith.constant 0 : index
    %c0_4 = arith.constant 0 : index
    %3 = vector.load %arg3[%c0_3, %c0_4] : memref<1x32xf32, #tpu.memory_space<vmem>>, vector<1x32xf32>
    %4 = vector.broadcast %3 : vector<1x32xf32> to vector<8x32xf32>
    %5 = arith.addf %2, %4 : vector<8x32xf32>
    %c0_5 = arith.constant 0 : index
    %c0_6 = arith.constant 0 : index
    %6 = vector.load %arg4[%c0_5, %c0_6] : memref<8x32xf32, #tpu.memory_space<vmem>>, vector<8x32xf32>
    %7 = arith.addf %5, %6 : vector<8x32xf32>
    %c0_7 = arith.constant 0 : index
    %c0_8 = arith.constant 0 : index
    %8 = vector.load %arg5[%c0_7, %c0_8] : memref<8x32xf32, #tpu.memory_space<vmem>>, vector<8x32xf32>
    tpu.vector_store %arg5[%c0_7, %c0_8], %7 {strides = array<i32>} : memref<8x32xf32, #tpu.memory_space<vmem>>, vector<8x32xf32>,
    return
  }
  func.func @transform_0(%arg0: i32) -> (i32, i32) {
    %c0_i32 = arith.constant 0 : i32
    %c0_i32_0 = arith.constant 0 : i32
    return %arg0, %c0_i32 : i32, i32
  }
  func.func @transform_1(%arg0: i32) -> (i32, i32) {
    %c0_i32 = arith.constant 0 : i32
    %c0_i32_0 = arith.constant 0 : i32
    %c0_i32_1 = arith.constant 0 : i32
    return %c0_i32, %c0_i32_0 : i32, i32
  }
  func.func @transform_2(%arg0: i32) -> (i32, i32) {
    %c0_i32 = arith.constant 0 : i32
    %c0_i32_0 = arith.constant 0 : i32
    %c0_i32_1 = arith.constant 0 : i32
    return %c0_i32, %c0_i32_0 : i32, i32
  }
  func.func @transform_3(%arg0: i32) -> (i32, i32) {
    %c1_i32 = arith.constant 1 : i32
    %c0_i32 = arith.constant 0 : i32
    %0 = arith.cmpi eq, %c1_i32, %c0_i32 : i32
    %c1_i32_0 = arith.constant 1 : i32
    %1 = arith.select %0, %c1_i32_0, %c1_i32 : i32
    %2 = arith.remsi %arg0, %1 : i32
    %c0_i32_1 = arith.constant 0 : i32
    %3 = arith.cmpi ne, %2, %c0_i32_1 : i32
    %c0_i32_2 = arith.constant 0 : i32
    %4 = arith.cmpi slt, %2, %c0_i32_2 : i32
    %c0_i32_3 = arith.constant 0 : i32
    %5 = arith.cmpi slt, %1, %c0_i32_3 : i32
    %6 = arith.xori %4, %5 : i1
    %7 = arith.andi %6, %3 : i1
    %8 = arith.addi %2, %1 : i32
    %9 = arith.select %7, %8, %2 : i32
    %c0_i32_4 = arith.constant 0 : i32
    %c0_i32_5 = arith.constant 0 : i32
    return %9, %c0_i32_4 : i32, i32
  }
  func.func @transform_4(%arg0: i32) -> (i32, i32) {
    %c0_i32 = arith.constant 0 : i32
    %c0_i32_0 = arith.constant 0 : i32
    return %arg0, %c0_i32 : i32, i32
  }
}

</mosaic_0001>

<llo_original>
// kernel: tpu_custom_call.1
$region0: #{tpu_custom_call.1}
  #allocation0 [shape = 'u32[]', space=smem, size = 0x4, offset = 0x4, fixed_abs, tag = 'smem constant byte address 0x4 - core index']
  #allocation1 [shape = 'u32[144,128]{1,0:T(1,128)}', space=vmem, size = 0x12000, scoped, tag = 'internal scratch']
  %s0 = inlined_call_operand.vmem [shape: f32[16,4], index: 0, kind: input, shape index: {}]
  %s1 = inlined_call_operand.vmem [shape: f32[4,32], index: 1, kind: input, shape index: {}]
  %s2 = inlined_call_operand.vmem [shape: f32[1,32], index: 2, kind: input, shape index: {}]
  %s3 = inlined_call_operand.vmem [shape: f32[8,32], index: 3, kind: input, shape index: {}]
  %s4 = inlined_call_operand.hbm [shape: f32[16,32], index: 4, kind: output, shape index: {}]
  %s5 = sld [smem:[#allocation0]]
  $region49: #{tpu_custom_call.1} parent=0
    _
  %s7 = ssub.s32 1, %s5
  %s8 = scalar_select 0, %s7, %s5
  $region1: #{tpu_custom_call.1} parent=0
    #allocation2 [shape = 'u8[8192]{0}', space=vmem, size = 0x2000, scoped, tag = 'output window, operand 0']
    #allocation3 [shape = 's32[2]{0}', space=sflag, size = 0x8, scoped, tag = 'scoped memory for tpu_custom_call.1']
    %9 = vsyncpa [#allocation3], 0
    %s10 = scalar_lea.sflag [#allocation3], 1
    %11 = vsyncpa %s10, 0
    loop: start=0, step=1, limit=4
    $region2: #{tpu_custom_call.1} parent=1 // loop_pre_header
      _
    $region3: #{tpu_custom_call.1} parent=1 // loop_header
      %s13 = sphi 0, %s17
      %p14 = scmp.ge.s32.totalorder %s13, 4
      %s23 = sphi 0, %s25
      %s26 = sphi 0, %s23
      %s27 = sphi 0, %s26
      %s43 = sphi 0, %s27
      %s47 = sphi 0, %s47
      %s49 = sphi 0, %s47
      %s50 = sphi 0, %s49
      %s64 = sphi 0, %s50
      %s68 = sphi 0, %s68
      %s70 = sphi 0, %s68
      %s71 = sphi 0, %s70
      %s85 = sphi 0, %s71
      %s89 = sphi 0, %s89
      %s91 = sphi 0, %s89
      %s92 = sphi 0, %s91
      %s106 = sphi 0, %s92
      %s112 = sphi 0, %s114
      %s115 = sphi 0, %s112
      %s116 = sphi 0, %s115
      %s132 = sphi 0, %s116
    $region4: #{tpu_custom_call.1} parent=1 // loop_header_branch
      %16 = sbr.rel (%p14) target = $region8
    $region5: #{tpu_custom_call.1} parent=1 // loop_body
      %s18 = ssub.s32 %s13, 1
      %s19 = ssub.s32 %s13, 2
      %s20 = sadd.s32 %s13, 1
      %s21 = ssub.s32 %s13, %s20
      %p22 = scmp.eq.s32.totalorder %s21, 0
      %s24 = sadd.s32 %s23, 1
      %s25 = scalar_select %p22, %s23, %s24
      %p28 = pneg %p22
      %p29 = scmp.eq.s32.totalorder %s13, 1
      %p30 = por %p28, %p29
      %p31 = scmp.ne.s32.totalorder %s23, %s26
      %p32 = scmp.eq.s32.totalorder %s13, 0
      %p33 = por %p31, %p32
      %p34 = scmp.ne.s32.totalorder %s23, %s26
      %p35 = scmp.eq.s32.totalorder %s18, 1
      %p36 = por %p34, %p35
      %p37 = scmp.ne.s32.totalorder %s26, %s27
      %p38 = scmp.eq.s32.totalorder %s18, 0
      %p39 = por %p37, %p38
      %p40 = scmp.ne.s32.totalorder %s26, %s27
      %p41 = scmp.eq.s32.totalorder %s19, 1
      %p42 = por %p40, %p41
      %p44 = scmp.ne.s32.totalorder %s27, %s43
      %p45 = scmp.eq.s32.totalorder %s19, 0
      %p46 = por %p44, %p45
      %s48 = sadd.s32 %s47, 1
      %p51 = scmp.eq.s32.totalorder %s13, 1
      %p52 = scmp.ne.s32.totalorder %s47, %s49
      %p53 = scmp.eq.s32.totalorder %s13, 0
      %p54 = por %p52, %p53
      %p55 = scmp.ne.s32.totalorder %s47, %s49
      %p56 = scmp.eq.s32.totalorder %s18, 1
      %p57 = por %p55, %p56
      %p58 = scmp.ne.s32.totalorder %s49, %s50
      %p59 = scmp.eq.s32.totalorder %s18, 0
      %p60 = por %p58, %p59
      %p61 = scmp.ne.s32.totalorder %s49, %s50
      %p62 = scmp.eq.s32.totalorder %s19, 1
      %p63 = por %p61, %p62
      %p65 = scmp.ne.s32.totalorder %s50, %s64
      %p66 = scmp.eq.s32.totalorder %s19, 0
      %p67 = por %p65, %p66
      %s69 = sadd.s32 %s68, 1
      %p72 = scmp.eq.s32.totalorder %s13, 1
      %p73 = scmp.ne.s32.totalorder %s68, %s70
      %p74 = scmp.eq.s32.totalorder %s13, 0
      %p75 = por %p73, %p74
      %p76 = scmp.ne.s32.totalorder %s68, %s70
      %p77 = scmp.eq.s32.totalorder %s18, 1
      %p78 = por %p76, %p77
      %p79 = scmp.ne.s32.totalorder %s70, %s71
      %p80 = scmp.eq.s32.totalorder %s18, 0
      %p81 = por %p79, %p80
      %p82 = scmp.ne.s32.totalorder %s70, %s71
      %p83 = scmp.eq.s32.totalorder %s19, 1
      %p84 = por %p82, %p83
      %p86 = scmp.ne.s32.totalorder %s71, %s85
      %p87 = scmp.eq.s32.totalorder %s19, 0
      %p88 = por %p86, %p87
      %s90 = sadd.s32 %s89, 1
      %p93 = scmp.eq.s32.totalorder %s13, 1
      %p94 = scmp.ne.s32.totalorder %s89, %s91
      %p95 = scmp.eq.s32.totalorder %s13, 0
      %p96 = por %p94, %p95
      %p97 = scmp.ne.s32.totalorder %s89, %s91
      %p98 = scmp.eq.s32.totalorder %s18, 1
      %p99 = por %p97, %p98
      %p100 = scmp.ne.s32.totalorder %s91, %s92
      %p101 = scmp.eq.s32.totalorder %s18, 0
      %p102 = por %p100, %p101
      %p103 = scmp.ne.s32.totalorder %s91, %s92
      %p104 = scmp.eq.s32.totalorder %s19, 1
      %p105 = por %p103, %p104
      %p107 = scmp.ne.s32.totalorder %s92, %s106
      %p108 = scmp.eq.s32.totalorder %s19, 0
      %p109 = por %p107, %p108
      %s110 = ssub.s32 %s13, %s20
      %p111 = scmp.eq.s32.totalorder %s110, 0
      %s113 = sadd.s32 %s112, 1
      %s114 = scalar_select %p111, %s112, %s113
      %p117 = pneg %p111
      %p118 = scmp.eq.s32.totalorder %s13, 1
      %p119 = por %p117, %p118
      %p120 = scmp.ne.s32.totalorder %s112, %s115
      %p121 = scmp.eq.s32.totalorder %s13, 0
      %p122 = por %p120, %p121
      %p123 = scmp.ne.s32.totalorder %s112, %s115
      %p124 = scmp.eq.s32.totalorder %s18, 1
      %p125 = por %p123, %p124
      %p126 = scmp.ne.s32.totalorder %s115, %s116
      %p127 = scmp.eq.s32.totalorder %s18, 0
      %p128 = por %p126, %p127
      %p129 = scmp.ne.s32.totalorder %s115, %s116
      %p130 = scmp.eq.s32.totalorder %s19, 1
      %p131 = por %p129, %p130
      %p133 = scmp.ne.s32.totalorder %s116, %s132
      %p134 = scmp.eq.s32.totalorder %s19, 0
      %p135 = por %p133, %p134
      %p136 = scmp.le.s32.totalorder 1, %s13
      %p137 = scmp.lt.s32.totalorder %s13, 3
      %p138 = pnand %p136, %p137
      %p139 = pneg %p138
      // Predicated region
      $region9: #{tpu_custom_call.1} parent=5 // pred_check
        _
      $region10: #{tpu_custom_call.1} parent=5 // pred_check_branch
        %141 = sbr.rel (%p138) target = $region12
      $region11: #{tpu_custom_call.1} parent=5 // pred_region
        %s142 = ssub.s32 %s13, 1
        // Predicated region
        $region13: #{tpu_custom_call.1} parent=11 // pred_check
          %p143 = pneg %p60
        $region14: #{tpu_custom_call.1} parent=11 // pred_check_branch
          %145 = sbr.rel (%p143) target = $region16
        $region15: #{tpu_custom_call.1} parent=11 // pred_region
          _
        $region16: #{tpu_custom_call.1} parent=11 // pred_fallthru
          _
        // Predicated region
        $region17: #{tpu_custom_call.1} parent=11 // pred_check
          %p146 = pneg %p81
        $region18: #{tpu_custom_call.1} parent=11 // pred_check_branch
          %148 = sbr.rel (%p146) target = $region20
        $region19: #{tpu_custom_call.1} parent=11 // pred_region
          _
        $region20: #{tpu_custom_call.1} parent=11 // pred_fallthru
          _
        // Predicated region
        $region21: #{tpu_custom_call.1} parent=11 // pred_check
          %p149 = pneg %p102
        $region22: #{tpu_custom_call.1} parent=11 // pred_check_branch
          %151 = sbr.rel (%p149) target = $region24
        $region23: #{tpu_custom_call.1} parent=11 // pred_region
          _
        $region24: #{tpu_custom_call.1} parent=11 // pred_fallthru
          _
      $region12: #{tpu_custom_call.1} parent=5 // pred_fallthru
        _
      %p152 = scmp.lt.s32.totalorder %s13, 2
      // Predicated region
      $region25: #{tpu_custom_call.1} parent=5 // pred_check
        %p153 = pneg %p152
      $region26: #{tpu_custom_call.1} parent=5 // pred_check_branch
        %155 = sbr.rel (%p153) target = $region28
      $region27: #{tpu_custom_call.1} parent=5 // pred_region
        // Predicated region
        $region29: #{tpu_custom_call.1} parent=27 // pred_check
          %p156 = pneg %p33
        $region30: #{tpu_custom_call.1} parent=27 // pred_check_branch
          %158 = sbr.rel (%p156) target = $region32
        $region31: #{tpu_custom_call.1} parent=27 // pred_region
          %p159 = scmp.lt.s32.totalorder %s13, 1
          %s160 = scalar_select %p159, %s13, 1
          %s161 = smul.addr %s160, 8
          %s162 = scalar_lea.vmem %s0, %s161
        $region32: #{tpu_custom_call.1} parent=27 // pred_fallthru
          _
      $region28: #{tpu_custom_call.1} parent=5 // pred_fallthru
        _
      %p163 = scmp.le.s32.totalorder 1, %s13
      %p164 = scmp.lt.s32.totalorder %s13, 3
      %p165 = pnand %p163, %p164
      %p166 = pneg %p165
      // Predicated region
      $region33: #{tpu_custom_call.1} parent=5 // pred_check
        _
      $region34: #{tpu_custom_call.1} parent=5 // pred_check_branch
        %168 = sbr.rel (%p165) target = $region36
      $region35: #{tpu_custom_call.1} parent=5 // pred_region
        %s169 = ssub.s32 %s13, 1
        %p170 = scmp.lt.s32.totalorder %s18, 1
        %s171 = scalar_select %p170, %s18, 1
        %s172 = smul.addr %s171, 8
        %s173 = scalar_lea.vmem %s0, %s172
        %p174 = pneg %p39
        %p175 = pneg %p36
        %p176 = pneg %p60
        %p177 = pneg %p57
        %p178 = pneg %p81
        %p179 = pneg %p78
        %p180 = pneg %p102
        %p181 = pneg %p99
        %p182 = pneg %p128
        %p183 = pneg %p125
        %s184 = sand.u32 %s115, 1
        %s185 = scalar_lea.sflag [#allocation3], %s184
        %s186 = sand.u32 %s115, 1
        %s187 = smul.addr %s186, 8
        %s188 = scalar_lea.vmem [#allocation2], %s187
        %p189 = scmp.lt.s32.totalorder %s18, 1
        %s190 = scalar_select %p189, %s18, 1
        %s191 = smul.addr %s190, 8
        %s192 = scalar_lea.vmem %s0, %s191
        %v193 = vld [vmem:[%s192] sm:$0xff]
        %v194 = vld [vmem:[%s1] sm:$0xf]
        %v195 = vld [vmem:[%s2] sm:$0x1]
        %v197 = vlaneseq
        %v198 = vshrl.u32 %v197, 7
        %v199 = vsub.s32 0, %v198
        %v200 = vrot.slane %v195, %v199
        %vm202 = vcmask 31744
        %v204 = vsel %vm202, %v193, 0
        %vm206 = vcmask 1043456
        %v208 = vsel %vm206, %v194, 0
        %210 = vmatprep.subr.mxu0 0.0
        %211 = vmatpush1.msra.mxu0 %v208
        %212 = vmatprep.subr.mxu0 0.0
        %213 = vmatpush1.msra.mxu0 0.0
        %214 = vmatprep.subr.mxu0 0.0
        %215 = vmatpush1.msra.mxu0 0.0
        %216 = vmatprep.subr.mxu0 0.0
        %217 = vmatpush1.msra.mxu0 0.0
        %218 = vmatprep.subr.mxu0 0.0
        %219 = vmatpush1.msra.mxu0 0.0
        %220 = vmatprep.subr.mxu0 0.0
        %221 = vmatpush1.msra.mxu0 0.0
        %222 = vmatprep.subr.mxu0 0.0
        %223 = vmatpush1.msra.mxu0 0.0
        %224 = vmatprep.subr.mxu0 0.0
        %225 = vmatpush1.msra.mxu0 0.0
        %226 = vmatprep.subr.mxu0 0.0
        %227 = vmatpush1.msra.mxu0 0.0
        %228 = vmatprep.subr.mxu0 0.0
        %229 = vmatpush1.msra.mxu0 0.0
        %230 = vmatprep.subr.mxu0 0.0
        %231 = vmatpush1.msra.mxu0 0.0
        %232 = vmatprep.subr.mxu0 0.0
        %233 = vmatpush1.msra.mxu0 0.0
        %234 = vmatprep.subr.mxu0 0.0
        %235 = vmatpush1.msra.mxu0 0.0
        %236 = vmatprep.subr.mxu0 0.0
        %237 = vmatpush1.msra.mxu0 0.0
        %238 = vmatprep.subr.mxu0 0.0
        %239 = vmatpush1.msra.mxu0 0.0
        %240 = vmatprep.subr.mxu0 0.0
        %241 = vmatpush1.msra.mxu0 0.0
        %242 = vmatprep.subr.mxu0 0.0
        %243 = vmatpush1.msra.mxu0 0.0
        %244 = vmatprep.subr.mxu0 0.0
        %245 = vmatpush1.msra.mxu0 0.0
        %246 = vmatprep.subr.mxu0 0.0
        %247 = vmatpush1.msra.mxu0 0.0
        %248 = vmatprep.subr.mxu0 0.0
        %249 = vmatpush1.msra.mxu0 0.0
        %250 = vmatprep.subr.mxu0 0.0
        %251 = vmatpush1.msra.mxu0 0.0
        %252 = vmatprep.subr.mxu0 0.0
        %253 = vmatpush1.msra.mxu0 0.0
        %254 = vmatprep.subr.mxu0 0.0
        %255 = vmatpush1.msra.mxu0 0.0
        %256 = vmatprep.subr.mxu0 0.0
        %257 = vmatpush1.msra.mxu0 0.0
        %258 = vmatprep.subr.mxu0 0.0
        %259 = vmatpush1.msra.mxu0 0.0
        %260 = vmatprep.subr.mxu0 0.0
        %261 = vmatpush1.msra.mxu0 0.0
        %262 = vmatprep.subr.mxu0 0.0
        %263 = vmatpush1.msra.mxu0 0.0
        %264 = vmatprep.subr.mxu0 0.0
        %265 = vmatpush1.msra.mxu0 0.0
        %266 = vmatprep.subr.mxu0 0.0
        %267 = vmatpush1.msra.mxu0 0.0
        %268 = vmatprep.subr.mxu0 0.0
        %269 = vmatpush1.msra.mxu0 0.0
        %270 = vmatprep.subr.mxu0 0.0
        %271 = vmatpush1.msra.mxu0 0.0
        %272 = vmatprep.subr.mxu0 0.0
        %273 = vmatpush1.msra.mxu0 0.0
        %274 = vmatprep.mubr.f32.mxu0 0.0
        %275 = vmatmul.mubr.f32.gmra.mrb[0].mxu0 %v204
        %v276 = vpop.f32.mrb[0].mxu0
        %v277 = vadd.f32 %v200, %v276
        %v278 = vpop.f32.mrb[0].mxu0
        %279 = vdwg.mxu0
        %v280 = vld [vmem:[%s3] sm:$0xff]
        %v281 = vadd.f32 %v277, %v280
        %vm282 = vcmask 261120
        %283 = vst.msk [vmem:[%s188] sm:$0xff] %vm282, %v281
        %s284 = sand.u32 %s115, 1
        %s285 = scalar_lea.sflag [#allocation3], %s284
        %s286 = sand.u32 %s115, 1
        %s287 = smul.addr %s286, 8
        %s288 = scalar_lea.vmem [#allocation2], %s287
        // Predicated region
        $region37: #{tpu_custom_call.1} parent=35 // pred_check
          %p289 = pneg %p125
        $region38: #{tpu_custom_call.1} parent=35 // pred_check_branch
          %291 = sbr.rel (%p289) target = $region40
        $region39: #{tpu_custom_call.1} parent=35 // pred_region
          %s293 = ssub.s32 128, 128
          %294 = vsyncadd %s285, %s293
          %s295 = smul.addr %s18, 128
          %s296 = scalar_lea.hbm %s4, %s295
          %s298 = sshll.u32 %s288, 4
          %s299 = int_to_ptr.vmem [resolvable:$true] %s298
          %301 = dma.vmem_to_hbm [thread:$0]  %s299, 128, %s296, %s285
        $region40: #{tpu_custom_call.1} parent=35 // pred_fallthru
          _
      $region36: #{tpu_custom_call.1} parent=5 // pred_fallthru
        _
      %p302 = scmp.le.s32.totalorder 2, %s13
      // Predicated region
      $region41: #{tpu_custom_call.1} parent=5 // pred_check
        %p303 = pneg %p302
      $region42: #{tpu_custom_call.1} parent=5 // pred_check_branch
        %305 = sbr.rel (%p303) target = $region44
      $region43: #{tpu_custom_call.1} parent=5 // pred_region
        %s306 = ssub.s32 %s13, 2
        // Predicated region
        $region45: #{tpu_custom_call.1} parent=43 // pred_check
          %p307 = pneg %p131
        $region46: #{tpu_custom_call.1} parent=43 // pred_check_branch
          %309 = sbr.rel (%p307) target = $region48
        $region47: #{tpu_custom_call.1} parent=43 // pred_region
          %s310 = sand.u32 %s116, 1
          %s311 = scalar_lea.sflag [#allocation3], %s310
          %s312 = sand.u32 %s116, 1
          %s313 = smul.addr %s312, 8
          %s314 = scalar_lea.vmem [#allocation2], %s313
          %315 = dma.done %s311, 128
        $region48: #{tpu_custom_call.1} parent=43 // pred_fallthru
          _
      $region44: #{tpu_custom_call.1} parent=5 // pred_fallthru
        _
    $region6: #{tpu_custom_call.1} parent=1 // loop_footer
      %s17 = sadd.s32 1, %s13
    $region7: #{tpu_custom_call.1} parent=1 // loop_footer_branch
      %12 = sbr.rel target = $region3
    $region8: #{tpu_custom_call.1} parent=1 // loop_exit
      _
    %316 = vsyncpa [#allocation3], 1
    %s317 = scalar_lea.sflag [#allocation3], 1
    %318 = vsyncpa %s317, 1

</llo_original>
